<compile_context>
chip_gen: v5e
topology: v5e:2x2
jax: 0.10.0
libtpu: 0.0.40
codegen_flags: <defaults>
</compile_context>

<pallas_src>
import jax
import jax.numpy as jnp
import numpy as np
from jax.experimental import pallas as pl
from jax.experimental.pallas import tpu as pltpu


def _pick_tile(n):
    # Largest lane-dense tile (multiple of 128) that divides N.  T <= 4096 keeps the
    # (128, T) f32 hidden activation <= 2 MiB, comfortably inside VMEM on v5e/v6e/v7x
    # together with the double-buffered input/output blocks.
    for t in (4096, 2048, 1024, 512, 256, 128):
        if n % t == 0:
            return t
    return n  # tiny / odd sizes: one full-width block (block == full dim is legal)


def _channel_trans_kernel(x_ref, w1t_ref, w2t_ref, b2_ref, w3t_ref, out_ref):
    """channel_trans MLP on a feature-major (3, T) tile, fused with the /2 average."""
    x = x_ref[0]                                                              # (3, T)
    # Linear(3,9,no bias) -> ReLU -> Linear(9,128)+b -> ReLU -> Linear(128,3,no bias) -> Sigmoid
    h1 = jnp.maximum(jnp.dot(w1t_ref[...], x,
                             preferred_element_type=jnp.float32), 0.0)        # (9, T)
    h2 = jnp.maximum(jnp.dot(w2t_ref[...], h1,
                             preferred_element_type=jnp.float32) + b2_ref[...], 0.0)  # (128, T)
    y = jax.nn.sigmoid(jnp.dot(w3t_ref[...], h2,
                               preferred_element_type=jnp.float32))            # (3, T)
    out_ref[0] = (y + x) * 0.5                           # images[ind] = (trans + orig) / 2


def _color_loss_kernel(x_ref, o_ref, sm_ref, nm_ref, cnt_ref,
                       loss_ref, sem_acc, neg_acc):
    """Color loss of the LAST image, in natural per-channel (3, T) layout.

    Reconstructs the pre-average transformed image y = 2*out - x (out = (y + x)/2),
    so the MLP is not recomputed.  Accumulates per-channel masked sums across pixel
    tiles, then applies the count division and the cosine-like combine at the end.
    """
    j = pl.program_id(0)

    @pl.when(j == 0)
    def _init():
        sem_acc[...] = jnp.zeros_like(sem_acc)
        neg_acc[...] = jnp.zeros_like(neg_acc)

    y = 2.0 * o_ref[0] - x_ref[0]                        # (3, T) transformed channels
    sm = sm_ref[0]                                       # (1, T) mask, broadcast over channels
    nm = nm_ref[0]
    sem_acc[...] += jnp.sum(y * sm, axis=1, keepdims=True)   # (3, 1) per-channel partial sums
    neg_acc[...] += jnp.sum(y * nm, axis=1, keepdims=True)

    @pl.when(j == pl.num_programs(0) - 1)
    def _finalize():
        sem_val = sem_acc[...] / cnt_ref[0, 0]           # sum-then-divide (reference order)
        neg_val = neg_acc[...] / cnt_ref[0, 1]
        num = jnp.sum(sem_val * neg_val)
        den = jnp.sqrt(jnp.sum(sem_val * sem_val)) + jnp.sqrt(jnp.sum(neg_val * neg_val))
        loss_ref[0, 0] = num / den


def jsrcnn_v2_forward(images, sem_mask, neg_mask, sem_mask_c, neg_mask_c, params):
    W1, W2, b2, W3 = params
    B, C, H, W = images.shape
    assert C == 3
    N = H * W
    T = _pick_tile(N)
    NT = N // T
    last = B - 1

    # Raw row-major per-image reshape (3,H,W) -> (H*W,3) exactly as the reference,
    # then transpose to feature-major (3, H*W) so all kernel blocks are lane-dense.
    x_fm = jnp.swapaxes(images.reshape(B, N, 3), 1, 2)             # (B, 3, N)

    # Weights pre-transposed for the feature-major matmuls.
    W1T = W1.T                      # (9, 3)
    W2T = W2.T                      # (128, 9)
    b2c = b2.reshape(128, 1)        # (128, 1), lane-broadcast in-kernel
    W3T = W3.T                      # (3, 128)

    # ---- channel_trans MLP over all images (fully parallel, no loss work) ----
    out_fm = pl.pallas_call(
        _channel_trans_kernel,
        out_shape=jax.ShapeDtypeStruct((B, 3, N), jnp.float32),
        grid=(B, NT),
        in_specs=[
            pl.BlockSpec((1, 3, T), lambda b, j: (b, 0, j)),       # x (feature-major)
            pl.BlockSpec((9, 3), lambda b, j: (0, 0)),             # W1^T (DMA'd once)
            pl.BlockSpec((128, 9), lambda b, j: (0, 0)),           # W2^T
            pl.BlockSpec((128, 1), lambda b, j: (0, 0)),           # b2 column
            pl.BlockSpec((3, 128), lambda b, j: (0, 0)),           # W3^T
        ],
        out_specs=pl.BlockSpec((1, 3, T), lambda b, j: (b, 0, j)),
        compiler_params=pltpu.CompilerParams(
            dimension_semantics=("parallel", "parallel")),         # no cross-step state
    )(x_fm, W1T, W2T, b2c, W3T)

    # Back to natural NCHW layout (this transpose is needed for the return value anyway).
    out_nat = jnp.swapaxes(out_fm, 1, 2).reshape(B, 3, N)          # (B, 3, H*W) natural
    out_images = out_nat.reshape(B, 3, H, W)

    # ---- color loss: only the last image's loss survives the reference's overwrite ----
    x_nat = images.reshape(B, 3, N)                                # free view, natural layout
    sm = sem_mask.reshape(B, 1, N)                                 # free views, lane-dense rows
    nm = neg_mask.reshape(B, 1, N)
    counts = jnp.stack([sem_mask_c[last], neg_mask_c[last]]).astype(jnp.float32).reshape(1, 2)

    loss = pl.pallas_call(
        _color_loss_kernel,
        out_shape=jax.ShapeDtypeStruct((1, 1), jnp.float32),
        grid=(NT,),
        in_specs=[
            pl.BlockSpec((1, 3, T), lambda j: (last, 0, j)),       # original image (last)
            pl.BlockSpec((1, 3, T), lambda j: (last, 0, j)),       # averaged output (last)
            pl.BlockSpec((1, 1, T), lambda j: (last, 0, j)),       # sem mask row
            pl.BlockSpec((1, 1, T), lambda j: (last, 0, j)),       # neg mask row
            pl.BlockSpec(memory_space=pltpu.MemorySpace.SMEM),     # [sem_c, neg_c] scalars
        ],
        out_specs=pl.BlockSpec((1, 1), lambda j: (0, 0),
                               memory_space=pltpu.MemorySpace.SMEM),
        scratch_shapes=[pltpu.VMEM((3, 1), jnp.float32),           # per-channel sem sums
                        pltpu.VMEM((3, 1), jnp.float32)],          # per-channel neg sums
        compiler_params=pltpu.CompilerParams(
            dimension_semantics=("arbitrary",)),                   # reduction over pixel tiles
    )(x_nat, out_nat, sm, nm, counts)

    return out_images, loss[0, 0]


def _reference(images, sem_mask, neg_mask, sem_mask_c, neg_mask_c, params):
    """Pure-JAX replica of the PyTorch forward (pre-maskrcnn part)."""
    W1, W2, b2, W3 = params
    B, C, H, W = images.shape
    outs, loss = [], None
    for i in range(B):
        img = images[i]
        x = img.reshape(H * W, 3)
        h = jnp.maximum(x @ W1, 0.0)
        h = jnp.maximum(h @ W2 + b2, 0.0)
        y = jax.nn.sigmoid(h @ W3)
        y_img = y.reshape(3, H, W)
        sem_val = (y_img * sem_mask[i]).sum(axis=(1, 2)) / sem_mask_c[i]
        neg_val = (y_img * neg_mask[i]).sum(axis=(1, 2)) / neg_mask_c[i]
        loss = ((sem_val * neg_val).sum()
                / (jnp.sqrt((sem_val ** 2).sum()) + jnp.sqrt((neg_val ** 2).sum())))
        outs.append((y_img + img) * 2.0 / 4.0)
    return jnp.stack(outs), loss


if __name__ == "__main__":
    key = jax.random.PRNGKey(0)
    k = jax.random.split(key, 8)
    B, H, W = 2, 16, 16

    images = jax.random.uniform(k[0], (B, 3, H, W), dtype=jnp.float32)
    sem_mask = (jax.random.uniform(k[1], (B, H, W)) > 0.5).astype(jnp.float32)
    neg_mask = (jax.random.uniform(k[2], (B, H, W)) > 0.5).astype(jnp.float32)
    sem_c = jnp.maximum(sem_mask.sum(axis=(1, 2)), 1.0)
    neg_c = jnp.maximum(neg_mask.sum(axis=(1, 2)), 1.0)

    # Deterministic parameter init (Linear weights stored pre-transposed: in x out).
    W1 = jax.random.normal(k[3], (3, 9), jnp.float32) * 0.5     # Linear(3,9, bias=False)
    W2 = jax.random.normal(k[4], (9, 128), jnp.float32) * 0.2   # Linear(9,128)
    b2 = jax.random.normal(k[5], (128,), jnp.float32) * 0.1
    W3 = jax.random.normal(k[6], (128, 3), jnp.float32) * 0.2   # Linear(128,3, bias=False)
    params = (W1, W2, b2, W3)

    out_img, color_loss = jsrcnn_v2_forward(images, sem_mask, neg_mask, sem_c, neg_c, params)
    jax.block_until_ready((out_img, color_loss))

    ref_out, ref_loss = _reference(images, sem_mask, neg_mask, sem_c, neg_c, params)
    assert np.allclose(np.asarray(out_img), np.asarray(ref_out), atol=1e-5, rtol=1e-5)
    assert np.allclose(float(color_loss), float(ref_loss), atol=1e-5, rtol=1e-5)

    print("KERNEL_OK")
</pallas_src>

<mosaic_0001>
module attributes {stable_mosaic.version = 11 : i64} {
  func.func @_channel_trans_kernel(%arg0: i32, %arg1: i32, %arg2: memref<1x3x256xf32, #tpu.memory_space<vmem>>, %arg3: memref<9x3xf32, #tpu.memory_space<vmem>>, %arg4: memref<128x9xf32, #tpu.memory_space<vmem>>, %arg5: memref<128x1xf32, #tpu.memory_space<vmem>>, %arg6: memref<3x128xf32, #tpu.memory_space<vmem>>, %arg7: memref<1x3x256xf32, #tpu.memory_space<vmem>>) attributes {dimension_semantics = [#tpu.dimension_semantics<parallel>, #tpu.dimension_semantics<parallel>], iteration_bounds = array<i64: 2, 1>, scalar_prefetch = 0 : i64, scratch_operands = 0 : i64, tpu.core_type = #tpu.core_type<tc>, window_params = [{transform_indices = @transform_0, window_bounds = array<i64: 1, 3, 256>}, {pipeline_mode = #tpu.pipeline_mode<synchronous>, transform_indices = @transform_1, window_bounds = array<i64: 9, 3>}, {pipeline_mode = #tpu.pipeline_mode<synchronous>, transform_indices = @transform_2, window_bounds = array<i64: 128, 9>}, {pipeline_mode = #tpu.pipeline_mode<synchronous>, transform_indices = @transform_3, window_bounds = array<i64: 128, 1>}, {pipeline_mode = #tpu.pipeline_mode<synchronous>, transform_indices = @transform_4, window_bounds = array<i64: 3, 128>}, {transform_indices = @transform_5, window_bounds = array<i64: 1, 3, 256>}]} {
    %c0 = arith.constant 0 : index
    %c0_0 = arith.constant 0 : index
    %c0_1 = arith.constant 0 : index
    %0 = vector.load %arg2[%c0, %c0_0, %c0_1] : memref<1x3x256xf32, #tpu.memory_space<vmem>>, vector<1x3x256xf32>
    %1 = vector.shape_cast %0 : vector<1x3x256xf32> to vector<3x256xf32>
    %c0_2 = arith.constant 0 : index
    %c0_3 = arith.constant 0 : index
    %2 = vector.load %arg3[%c0_2, %c0_3] : memref<9x3xf32, #tpu.memory_space<vmem>>, vector<9x3xf32>
    %cst = arith.constant dense<0.000000e+00> : vector<9x256xf32>
    %3 = tpu.matmul %2, %1, %cst {dimension_numbers = #tpu.dot_dimension_numbers<[1], [0], [0], [1], [0, 0, 1, 1], [], []>} : vector<9x3xf32>, vector<3x256xf32>, vector<9x256xf32> -> vector<9x256xf32>
    %cst_4 = arith.constant 0.000000e+00 : f32
    %4 = vector.broadcast %cst_4 : f32 to vector<9x256xf32>
    %5 = arith.maximumf %3, %4 : vector<9x256xf32>
    %c0_5 = arith.constant 0 : index
    %c0_6 = arith.constant 0 : index
    %6 = vector.load %arg4[%c0_5, %c0_6] : memref<128x9xf32, #tpu.memory_space<vmem>>, vector<128x9xf32>
    %cst_7 = arith.constant dense<0.000000e+00> : vector<128x256xf32>
    %7 = tpu.matmul %6, %5, %cst_7 {dimension_numbers = #tpu.dot_dimension_numbers<[1], [0], [0], [1], [0, 0, 1, 1], [], []>} : vector<128x9xf32>, vector<9x256xf32>, vector<128x256xf32> -> vector<128x256xf32>
    %c0_8 = arith.constant 0 : index
    %c0_9 = arith.constant 0 : index
    %8 = vector.load %arg5[%c0_8, %c0_9] : memref<128x1xf32, #tpu.memory_space<vmem>>, vector<128x1xf32>
    %9 = vector.broadcast %8 : vector<128x1xf32> to vector<128x256xf32>
    %10 = arith.addf %7, %9 : vector<128x256xf32>
    %cst_10 = arith.constant 0.000000e+00 : f32
    %11 = vector.broadcast %cst_10 : f32 to vector<128x256xf32>
    %12 = arith.maximumf %10, %11 : vector<128x256xf32>
    %c0_11 = arith.constant 0 : index
    %c0_12 = arith.constant 0 : index
    %13 = vector.load %arg6[%c0_11, %c0_12] : memref<3x128xf32, #tpu.memory_space<vmem>>, vector<3x128xf32>
    %cst_13 = arith.constant dense<0.000000e+00> : vector<3x256xf32>
    %14 = tpu.matmul %13, %12, %cst_13 {dimension_numbers = #tpu.dot_dimension_numbers<[1], [0], [0], [1], [0, 0, 1, 1], [], []>} : vector<3x128xf32>, vector<128x256xf32>, vector<3x256xf32> -> vector<3x256xf32>
    %15 = arith.negf %14 : vector<3x256xf32>
    %16 = math.exp %15 : vector<3x256xf32>
    %cst_14 = arith.constant 1.000000e+00 : f32
    %17 = vector.broadcast %cst_14 : f32 to vector<3x256xf32>
    %18 = arith.addf %17, %16 : vector<3x256xf32>
    %19 = arith.divf %17, %18 : vector<3x256xf32>
    %20 = arith.addf %19, %1 : vector<3x256xf32>
    %cst_15 = arith.constant 5.000000e-01 : f32
    %21 = vector.broadcast %cst_15 : f32 to vector<3x256xf32>
    %22 = arith.mulf %20, %21 : vector<3x256xf32>
    %c0_16 = arith.constant 0 : index
    %c0_17 = arith.constant 0 : index
    %c0_18 = arith.constant 0 : index
    %23 = vector.load %arg7[%c0_16, %c0_17, %c0_18] : memref<1x3x256xf32, #tpu.memory_space<vmem>>, vector<1x3x256xf32>
    %24 = vector.shape_cast %23 : vector<1x3x256xf32> to vector<3x256xf32>
    %25 = vector.shape_cast %22 : vector<3x256xf32> to vector<1x3x256xf32>
    tpu.vector_store %arg7[%c0_16, %c0_17, %c0_18], %25 {strides = array<i32>} : memref<1x3x256xf32, #tpu.memory_space<vmem>>, vector<1x3x256xf32>,
    return
  }
  func.func @transform_0(%arg0: i32, %arg1: i32) -> (i32, i32, i32) {
    %c0_i32 = arith.constant 0 : i32
    %c0_i32_0 = arith.constant 0 : i32
    return %arg0, %c0_i32, %arg1 : i32, i32, i32
  }
  func.func @transform_1(%arg0: i32, %arg1: i32) -> (i32, i32) {
    %c0_i32 = arith.constant 0 : i32
    %c0_i32_0 = arith.constant 0 : i32
    %c0_i32_1 = arith.constant 0 : i32
    return %c0_i32, %c0_i32_0 : i32, i32
  }
  func.func @transform_2(%arg0: i32, %arg1: i32) -> (i32, i32) {
    %c0_i32 = arith.constant 0 : i32
    %c0_i32_0 = arith.constant 0 : i32
    %c0_i32_1 = arith.constant 0 : i32
    return %c0_i32, %c0_i32_0 : i32, i32
  }
  func.func @transform_3(%arg0: i32, %arg1: i32) -> (i32, i32) {
    %c0_i32 = arith.constant 0 : i32
    %c0_i32_0 = arith.constant 0 : i32
    %c0_i32_1 = arith.constant 0 : i32
    return %c0_i32, %c0_i32_0 : i32, i32
  }
  func.func @transform_4(%arg0: i32, %arg1: i32) -> (i32, i32) {
    %c0_i32 = arith.constant 0 : i32
    %c0_i32_0 = arith.constant 0 : i32
    %c0_i32_1 = arith.constant 0 : i32
    return %c0_i32, %c0_i32_0 : i32, i32
  }
  func.func @transform_5(%arg0: i32, %arg1: i32) -> (i32, i32, i32) {
    %c0_i32 = arith.constant 0 : i32
    %c0_i32_0 = arith.constant 0 : i32
    return %arg0, %c0_i32, %arg1 : i32, i32, i32
  }
}

</mosaic_0001>

<llo_original>
// kernel: tpu_custom_call.1
$region0: #{tpu_custom_call.1}
  #allocation0 [shape = 'u32[]', space=smem, size = 0x4, offset = 0x4, fixed_abs, tag = 'smem constant byte address 0x4 - core index']
  #allocation1 [shape = 'u32[72,128]{1,0:T(1,128)}', space=vmem, size = 0x9000, scoped, tag = 'internal scratch']
  %s0 = inlined_call_operand.vmem [shape: f32[2,3,256], index: 0, kind: input, shape index: {}]
  %s1 = inlined_call_operand.vmem [shape: f32[9,3], index: 1, kind: input, shape index: {}]
  %s2 = inlined_call_operand.vmem [shape: f32[128,9], index: 2, kind: input, shape index: {}]
  %s3 = inlined_call_operand.vmem [shape: f32[128,1], index: 3, kind: input, shape index: {}]
  %s4 = inlined_call_operand.vmem [shape: f32[3,128], index: 4, kind: input, shape index: {}]
  %s5 = inlined_call_operand.vmem [shape: f32[2,3,256], index: 5, kind: output, shape index: {}]
  %s6 = sld [smem:[#allocation0]]
  $region53: #{tpu_custom_call.1} parent=0
    _
  %s8 = ssub.s32 1, %s6
  %s9 = scalar_select 0, %s8, %s6
  loop: start=0, step=1, limit=4
  $region2: #{tpu_custom_call.1} parent=0 // loop_pre_header
    _
  $region3: #{tpu_custom_call.1} parent=0 // loop_header
    %s11 = sphi 0, %s15
    %p12 = scmp.ge.s32.totalorder %s11, 4
    %s18 = sphi 0, %s30
    %s19 = sphi 0, %s26
    %s20 = sphi 0, %s18
    %s21 = sphi 0, %s19
    %s22 = sphi 0, %s20
    %s23 = sphi 0, %s21
    %s35 = sphi 0, %s37
    %s38 = sphi 0, %s35
    %s39 = sphi 0, %s38
    %s55 = sphi 0, %s39
    %s59 = sphi 0, %s59
    %s61 = sphi 0, %s59
    %s62 = sphi 0, %s61
    %s76 = sphi 0, %s62
    %s80 = sphi 0, %s80
    %s82 = sphi 0, %s80
    %s83 = sphi 0, %s82
    %s97 = sphi 0, %s83
    %s101 = sphi 0, %s101
    %s103 = sphi 0, %s101
    %s104 = sphi 0, %s103
    %s118 = sphi 0, %s104
    %s122 = sphi 0, %s122
    %s124 = sphi 0, %s122
    %s125 = sphi 0, %s124
    %s139 = sphi 0, %s125
    %s147 = sphi 0, %s149
    %s150 = sphi 0, %s147
    %s151 = sphi 0, %s150
    %s167 = sphi 0, %s151
  $region4: #{tpu_custom_call.1} parent=0 // loop_header_branch
    %14 = sbr.rel (%p12) target = $region8
  $region5: #{tpu_custom_call.1} parent=0 // loop_body
    %s16 = ssub.s32 %s11, 1
    %s17 = ssub.s32 %s11, 2
    %s24 = sadd.s32 1, %s19
    %p25 = scmp.ge.s32.totalorder %s24, 1
    %s26 = scalar_select %p25, 0, %s24
    %s27 = sadd.s32 1, %s18
    %s28 = scalar_select %p25, %s27, %s18
    %p29 = scmp.ge.s32.totalorder %s28, 2
    %s30 = scalar_select %p29, 0, %s28
    %s31 = ssub.s32 %s18, %s30
    %s32 = ssub.s32 %s19, %s26
    %s33 = sor.u32 %s31, %s32
    %p34 = scmp.eq.s32.totalorder %s33, 0
    %s36 = sadd.s32 %s35, 1
    %s37 = scalar_select %p34, %s35, %s36
    %p40 = pneg %p34
    %p41 = scmp.eq.s32.totalorder %s11, 1
    %p42 = por %p40, %p41
    %p43 = scmp.ne.s32.totalorder %s35, %s38
    %p44 = scmp.eq.s32.totalorder %s11, 0
    %p45 = por %p43, %p44
    %p46 = scmp.ne.s32.totalorder %s35, %s38
    %p47 = scmp.eq.s32.totalorder %s16, 1
    %p48 = por %p46, %p47
    %p49 = scmp.ne.s32.totalorder %s38, %s39
    %p50 = scmp.eq.s32.totalorder %s16, 0
    %p51 = por %p49, %p50
    %p52 = scmp.ne.s32.totalorder %s38, %s39
    %p53 = scmp.eq.s32.totalorder %s17, 1
    %p54 = por %p52, %p53
    %p56 = scmp.ne.s32.totalorder %s39, %s55
    %p57 = scmp.eq.s32.totalorder %s17, 0
    %p58 = por %p56, %p57
    %s60 = sadd.s32 %s59, 1
    %p63 = scmp.eq.s32.totalorder %s11, 1
    %p64 = scmp.ne.s32.totalorder %s59, %s61
    %p65 = scmp.eq.s32.totalorder %s11, 0
    %p66 = por %p64, %p65
    %p67 = scmp.ne.s32.totalorder %s59, %s61
    %p68 = scmp.eq.s32.totalorder %s16, 1
    %p69 = por %p67, %p68
    %p70 = scmp.ne.s32.totalorder %s61, %s62
    %p71 = scmp.eq.s32.totalorder %s16, 0
    %p72 = por %p70, %p71
    %p73 = scmp.ne.s32.totalorder %s61, %s62
    %p74 = scmp.eq.s32.totalorder %s17, 1
    %p75 = por %p73, %p74
    %p77 = scmp.ne.s32.totalorder %s62, %s76
    %p78 = scmp.eq.s32.totalorder %s17, 0
    %p79 = por %p77, %p78
    %s81 = sadd.s32 %s80, 1
    %p84 = scmp.eq.s32.totalorder %s11, 1
    %p85 = scmp.ne.s32.totalorder %s80, %s82
    %p86 = scmp.eq.s32.totalorder %s11, 0
    %p87 = por %p85, %p86
    %p88 = scmp.ne.s32.totalorder %s80, %s82
    %p89 = scmp.eq.s32.totalorder %s16, 1
    %p90 = por %p88, %p89
    %p91 = scmp.ne.s32.totalorder %s82, %s83
    %p92 = scmp.eq.s32.totalorder %s16, 0
    %p93 = por %p91, %p92
    %p94 = scmp.ne.s32.totalorder %s82, %s83
    %p95 = scmp.eq.s32.totalorder %s17, 1
    %p96 = por %p94, %p95
    %p98 = scmp.ne.s32.totalorder %s83, %s97
    %p99 = scmp.eq.s32.totalorder %s17, 0
    %p100 = por %p98, %p99
    %s102 = sadd.s32 %s101, 1
    %p105 = scmp.eq.s32.totalorder %s11, 1
    %p106 = scmp.ne.s32.totalorder %s101, %s103
    %p107 = scmp.eq.s32.totalorder %s11, 0
    %p108 = por %p106, %p107
    %p109 = scmp.ne.s32.totalorder %s101, %s103
    %p110 = scmp.eq.s32.totalorder %s16, 1
    %p111 = por %p109, %p110
    %p112 = scmp.ne.s32.totalorder %s103, %s104
    %p113 = scmp.eq.s32.totalorder %s16, 0
    %p114 = por %p112, %p113
    %p115 = scmp.ne.s32.totalorder %s103, %s104
    %p116 = scmp.eq.s32.totalorder %s17, 1
    %p117 = por %p115, %p116
    %p119 = scmp.ne.s32.totalorder %s104, %s118
    %p120 = scmp.eq.s32.totalorder %s17, 0
    %p121 = por %p119, %p120
    %s123 = sadd.s32 %s122, 1
    %p126 = scmp.eq.s32.totalorder %s11, 1
    %p127 = scmp.ne.s32.totalorder %s122, %s124
    %p128 = scmp.eq.s32.totalorder %s11, 0
    %p129 = por %p127, %p128
    %p130 = scmp.ne.s32.totalorder %s122, %s124
    %p131 = scmp.eq.s32.totalorder %s16, 1
    %p132 = por %p130, %p131
    %p133 = scmp.ne.s32.totalorder %s124, %s125
    %p134 = scmp.eq.s32.totalorder %s16, 0
    %p135 = por %p133, %p134
    %p136 = scmp.ne.s32.totalorder %s124, %s125
    %p137 = scmp.eq.s32.totalorder %s17, 1
    %p138 = por %p136, %p137
    %p140 = scmp.ne.s32.totalorder %s125, %s139
    %p141 = scmp.eq.s32.totalorder %s17, 0
    %p142 = por %p140, %p141
    %s143 = ssub.s32 %s18, %s30
    %s144 = ssub.s32 %s19, %s26
    %s145 = sor.u32 %s143, %s144
    %p146 = scmp.eq.s32.totalorder %s145, 0
    %s148 = sadd.s32 %s147, 1
    %s149 = scalar_select %p146, %s147, %s148
    %p152 = pneg %p146
    %p153 = scmp.eq.s32.totalorder %s11, 1
    %p154 = por %p152, %p153
    %p155 = scmp.ne.s32.totalorder %s147, %s150
    %p156 = scmp.eq.s32.totalorder %s11, 0
    %p157 = por %p155, %p156
    %p158 = scmp.ne.s32.totalorder %s147, %s150
    %p159 = scmp.eq.s32.totalorder %s16, 1
    %p160 = por %p158, %p159
    %p161 = scmp.ne.s32.totalorder %s150, %s151
    %p162 = scmp.eq.s32.totalorder %s16, 0
    %p163 = por %p161, %p162
    %p164 = scmp.ne.s32.totalorder %s150, %s151
    %p165 = scmp.eq.s32.totalorder %s17, 1
    %p166 = por %p164, %p165
    %p168 = scmp.ne.s32.totalorder %s151, %s167
    %p169 = scmp.eq.s32.totalorder %s17, 0
    %p170 = por %p168, %p169
    %p171 = scmp.le.s32.totalorder 1, %s11
    %p172 = scmp.lt.s32.totalorder %s11, 3
    %p173 = pnand %p171, %p172
    %p174 = pneg %p173
    // Predicated region
    $region9: #{tpu_custom_call.1} parent=5 // pred_check
      _
    $region10: #{tpu_custom_call.1} parent=5 // pred_check_branch
      %176 = sbr.rel (%p173) target = $region12
    $region11: #{tpu_custom_call.1} parent=5 // pred_region
      %s177 = ssub.s32 %s11, 1
      // Predicated region
      $region13: #{tpu_custom_call.1} parent=11 // pred_check
        %p178 = pneg %p72
      $region14: #{tpu_custom_call.1} parent=11 // pred_check_branch
        %180 = sbr.rel (%p178) target = $region16
      $region15: #{tpu_custom_call.1} parent=11 // pred_region
        _
      $region16: #{tpu_custom_call.1} parent=11 // pred_fallthru
        _
      // Predicated region
      $region17: #{tpu_custom_call.1} parent=11 // pred_check
        %p181 = pneg %p93
      $region18: #{tpu_custom_call.1} parent=11 // pred_check_branch
        %183 = sbr.rel (%p181) target = $region20
      $region19: #{tpu_custom_call.1} parent=11 // pred_region
        _
      $region20: #{tpu_custom_call.1} parent=11 // pred_fallthru
        _
      // Predicated region
      $region21: #{tpu_custom_call.1} parent=11 // pred_check
        %p184 = pneg %p114
      $region22: #{tpu_custom_call.1} parent=11 // pred_check_branch
        %186 = sbr.rel (%p184) target = $region24
      $region23: #{tpu_custom_call.1} parent=11 // pred_region
        _
      $region24: #{tpu_custom_call.1} parent=11 // pred_fallthru
        _
      // Predicated region
      $region25: #{tpu_custom_call.1} parent=11 // pred_check
        %p187 = pneg %p135
      $region26: #{tpu_custom_call.1} parent=11 // pred_check_branch
        %189 = sbr.rel (%p187) target = $region28
      $region27: #{tpu_custom_call.1} parent=11 // pred_region
        _
      $region28: #{tpu_custom_call.1} parent=11 // pred_fallthru
        _
    $region12: #{tpu_custom_call.1} parent=5 // pred_fallthru
      _
    %p190 = scmp.lt.s32.totalorder %s11, 2
    // Predicated region
    $region29: #{tpu_custom_call.1} parent=5 // pred_check
      %p191 = pneg %p190
    $region30: #{tpu_custom_call.1} parent=5 // pred_check_branch
      %193 = sbr.rel (%p191) target = $region32
    $region31: #{tpu_custom_call.1} parent=5 // pred_region
      // Predicated region
      $region33: #{tpu_custom_call.1} parent=31 // pred_check
        %p194 = pneg %p45
      $region34: #{tpu_custom_call.1} parent=31 // pred_check_branch
        %196 = sbr.rel (%p194) target = $region36
      $region35: #{tpu_custom_call.1} parent=31 // pred_region
        %s197 = smul.u32 2, %s19
        %p198 = scmp.lt.s32.totalorder %s18, 1
        %s199 = scalar_select %p198, %s18, 1
        %p200 = scmp.lt.s32.totalorder %s197, 1
        %s201 = scalar_select %p200, %s197, 1
        %s202 = smul.addr %s199, 2
        %s203 = sadd.s32 %s201, %s202
        %s204 = smul.addr %s203, 4
        %s205 = scalar_lea.vmem %s0, %s204
        %s206 = smul.u32 2, %s19
      $region36: #{tpu_custom_call.1} parent=31 // pred_fallthru
        _
    $region32: #{tpu_custom_call.1} parent=5 // pred_fallthru
      _
    %p207 = scmp.le.s32.totalorder 1, %s11
    %p208 = scmp.lt.s32.totalorder %s11, 3
    %p209 = pnand %p207, %p208
    %p210 = pneg %p209
    // Predicated region
    $region37: #{tpu_custom_call.1} parent=5 // pred_check
      _
    $region38: #{tpu_custom_call.1} parent=5 // pred_check_branch
      %212 = sbr.rel (%p209) target = $region40
    $region39: #{tpu_custom_call.1} parent=5 // pred_region
      %s213 = ssub.s32 %s11, 1
      %s214 = smul.u32 2, %s21
      %p215 = scmp.lt.s32.totalorder %s20, 1
      %s216 = scalar_select %p215, %s20, 1
      %p217 = scmp.lt.s32.totalorder %s214, 1
      %s218 = scalar_select %p217, %s214, 1
      %s219 = smul.addr %s216, 2
      %s220 = sadd.s32 %s218, %s219
      %s221 = smul.addr %s220, 4
      %s222 = scalar_lea.vmem %s0, %s221
      %p223 = pneg %p51
      %p224 = pneg %p48
      %p225 = pneg %p72
      %p226 = pneg %p69
      %p227 = pneg %p93
      %p228 = pneg %p90
      %p229 = pneg %p114
      %p230 = pneg %p111
      %p231 = pneg %p135
      %p232 = pneg %p132
      %p233 = pneg %p163
      %p234 = pneg %p160
      %s235 = smul.u32 2, %s21
      %p236 = scmp.lt.s32.totalorder %s20, 1
      %s237 = scalar_select %p236, %s20, 1
      %p238 = scmp.lt.s32.totalorder %s235, 1
      %s239 = scalar_select %p238, %s235, 1
      %s240 = smul.addr %s237, 2
      %s241 = sadd.s32 %s239, %s240
      %s242 = smul.addr %s241, 4
      %s243 = scalar_lea.vmem %s5, %s242
      %s244 = smul.u32 2, %s21
      %p245 = scmp.lt.s32.totalorder %s20, 1
      %s246 = scalar_select %p245, %s20, 1
      %p247 = scmp.lt.s32.totalorder %s244, 1
      %s248 = scalar_select %p247, %s244, 1
      %s249 = smul.addr %s246, 2
      %s250 = sadd.s32 %s248, %s249
      %s251 = smul.addr %s250, 4
      %s252 = scalar_lea.vmem %s0, %s251
      %s253 = smul.u32 2, %s21
      %s254 = smul.u32 2, %s21
      %p255 = scmp.lt.s32.totalorder %s20, 1
      %s256 = scalar_select %p255, %s20, 1
      %p257 = scmp.lt.s32.totalorder %s254, 1
      %s258 = scalar_select %p257, %s254, 1
      %s259 = smul.addr %s256, 2
      %s260 = sadd.s32 %s258, %s259
      %s261 = smul.addr %s260, 4
      %s262 = scalar_lea.vmem %s5, %s261
      %s263 = smul.u32 2, %s21
      %v264 = vld [vmem:[%s252] sm:$0x77]
      %v265 = vld [vmem:[%s1] sm:$0xff]
      %v266 = vld [vmem:[%s1 + $0x8] sm:$0x1]
      %268 = vst [vmem:[#allocation1] ss:$2 sm:$0xff] %v264
      %v269 = vld.sshfl [vmem:[#allocation1] sm:$0xff pattern:$0x75316420]
      %v270 = vld.sshfl [vmem:[#allocation1 + $0x8] sm:$0xff pattern:$0x75316420]
      %vm271 = vcmask 23552
      %v273 = vsel %vm271, %v265, 0
      %v276 = vsel %vm271, %v266, 0
      %vm278 = vcmask 1042432
      %v279 = vsel %vm278, %v269, 0
      %v281 = vsel %vm278, %v270, 0
      %283 = vmatpush.msra.mxu0 0.0
      %284 = vmatpush.msra.mxu0 0.0
      %285 = vmatpush.msra.mxu0 0.0
      %286 = vmatpush.msra.mxu0 0.0
      %287 = vmatpush.msra.mxu0 0.0
      %288 = vmatpush.msra.mxu0 0.0
      %289 = vmatpush.msra.mxu0 0.0
      %290 = vmatpush.msra.mxu0 0.0
      %291 = vmatpush.msra.mxu0 0.0
      %292 = vmatpush.msra.mxu0 0.0
      %293 = vmatpush.msra.mxu0 0.0
      %294 = vmatpush.msra.mxu0 0.0
      %295 = vmatpush.msra.mxu0 0.0
      %296 = vmatpush.msra.mxu0 0.0
      %297 = vmatpush.msra.mxu0 0.0
      %298 = vmatpush.msra.mxu0 %v279
      %299 = vmatmul.f32.gmra.mxu0 %v273
      %v300 = vpop.f32.mrf.mxu0
      %v301 = vadd.f32 0.0, %v300
      %302 = vmatmul.f32.gmra.mxu0 %v276
      %v303 = vpop.f32.mrf.mxu0
      %v304 = vadd.f32 0.0, %v303
      %305 = vdwg.mxu0
      %306 = vmatpush.msra.mxu0 0.0
      %307 = vmatpush.msra.mxu0 0.0
      %308 = vmatpush.msra.mxu0 0.0
      %309 = vmatpush.msra.mxu0 0.0
      %310 = vmatpush.msra.mxu0 0.0
      %311 = vmatpush.msra.mxu0 0.0
      %312 = vmatpush.msra.mxu0 0.0
      %313 = vmatpush.msra.mxu0 0.0
      %314 = vmatpush.msra.mxu0 0.0
      %315 = vmatpush.msra.mxu0 0.0
      %316 = vmatpush.msra.mxu0 0.0
      %317 = vmatpush.msra.mxu0 0.0
      %318 = vmatpush.msra.mxu0 0.0
      %319 = vmatpush.msra.mxu0 0.0
      %320 = vmatpush.msra.mxu0 0.0
      %321 = vmatpush.msra.mxu0 %v281
      %322 = vmatmul.f32.gmra.mxu0 %v273
      %v323 = vpop.f32.mrf.mxu0
      %v324 = vadd.f32 0.0, %v323
      %325 = vmatmul.f32.gmra.mxu0 %v276
      %v326 = vpop.f32.mrf.mxu0
      %v327 = vadd.f32 0.0, %v326
      %328 = vdwg.mxu0
      %v329 = vmax.f32 %v301, 0.0
      %v330 = vmax.f32 %v324, 0.0
      %v331 = vmax.f32 %v304, 0.0
      %v332 = vmax.f32 %v327, 0.0
      %v333 = vld [vmem:[%s2] sm:$0xff]
      %v334 = vld [vmem:[%s2 + $0x8] sm:$0xff]
      %v335 = vld [vmem:[%s2 + $0x10] sm:$0xff]
      %v336 = vld [vmem:[%s2 + $0x18] sm:$0xff]
      %v337 = vld [vmem:[%s2 + $0x20] sm:$0xff]
      %v338 = vld [vmem:[%s2 + $0x28] sm:$0xff]
      %v339 = vld [vmem:[%s2 + $0x30] sm:$0xff]
      %v340 = vld [vmem:[%s2 + $0x38] sm:$0xff]
      %v341 = vld [vmem:[%s2 + $0x40] sm:$0xff]
      %v342 = vld [vmem:[%s2 + $0x48] sm:$0xff]
      %v343 = vld [vmem:[%s2 + $0x50] sm:$0xff]
      %v344 = vld [vmem:[%s2 + $0x58] sm:$0xff]
      %v345 = vld [vmem:[%s2 + $0x60] sm:$0xff]
      %v346 = vld [vmem:[%s2 + $0x68] sm:$0xff]
      %v347 = vld [vmem:[%s2 + $0x70] sm:$0xff]
      %v348 = vld [vmem:[%s2 + $0x78] sm:$0xff]
      %v349 = vld [vmem:[%s3] sm:$0xff]
      %v350 = vld [vmem:[%s3 + $0x8] sm:$0xff]
      %v351 = vld [vmem:[%s3 + $0x10] sm:$0xff]
      %v352 = vld [vmem:[%s3 + $0x18] sm:$0xff]
      %v353 = vld [vmem:[%s3 + $0x20] sm:$0xff]
      %v354 = vld [vmem:[%s3 + $0x28] sm:$0xff]
      %v355 = vld [vmem:[%s3 + $0x30] sm:$0xff]
      %v356 = vld [vmem:[%s3 + $0x38] sm:$0xff]
      %v357 = vld [vmem:[%s3 + $0x40] sm:$0xff]
      %v358 = vld [vmem:[%s3 + $0x48] sm:$0xff]
      %v359 = vld [vmem:[%s3 + $0x50] sm:$0xff]
      %v360 = vld [vmem:[%s3 + $0x58] sm:$0xff]
      %v361 = vld [vmem:[%s3 + $0x60] sm:$0xff]
      %v362 = vld [vmem:[%s3 + $0x68] sm:$0xff]
      %v363 = vld [vmem:[%s3 + $0x70] sm:$0xff]
      %v364 = vld [vmem:[%s3 + $0x78] sm:$0xff]
      %366 = vset.pattern.permute.xlu0 0
      %367 = vperm.xlu0 %366, %v349
      %v368 = vpop.permute.xlu0 %367
      %371 = vset.pattern.permute.xlu0 0
      %372 = vperm.xlu0 %371, %v350
      %v373 = vpop.permute.xlu0 %372
      %376 = vset.pattern.permute.xlu0 0
      %377 = vperm.xlu0 %376, %v351
      %v378 = vpop.permute.xlu0 %377
      %381 = vset.pattern.permute.xlu0 0
      %382 = vperm.xlu0 %381, %v352
      %v383 = vpop.permute.xlu0 %382
      %386 = vset.pattern.permute.xlu0 0
      %387 = vperm.xlu0 %386, %v353
      %v388 = vpop.permute.xlu0 %387
      %391 = vset.pattern.permute.xlu0 0
      %392 = vperm.xlu0 %391, %v354
      %v393 = vpop.permute.xlu0 %392
      %396 = vset.pattern.permute.xlu0 0
      %397 = vperm.xlu0 %396, %v355
      %v398 = vpop.permute.xlu0 %397
      %401 = vset.pattern.permute.xlu0 0
      %402 = vperm.xlu0 %401, %v356
      %v403 = vpop.permute.xlu0 %402
      %406 = vset.pattern.permute.xlu0 0
      %407 = vperm.xlu0 %406, %v357
      %v408 = vpop.permute.xlu0 %407
      %411 = vset.pattern.permute.xlu0 0
      %412 = vperm.xlu0 %411, %v358
      %v413 = vpop.permute.xlu0 %412
      %416 = vset.pattern.permute.xlu0 0
      %417 = vperm.xlu0 %416, %v359
      %v418 = vpop.permute.xlu0 %417
      %421 = vset.pattern.permute.xlu0 0
      %422 = vperm.xlu0 %421, %v360
      %v423 = vpop.permute.xlu0 %422
      %426 = vset.pattern.permute.xlu0 0
      %427 = vperm.xlu0 %426, %v361
      %v428 = vpop.permute.xlu0 %427
      %431 = vset.pattern.permute.xlu0 0
      %432 = vperm.xlu0 %431, %v362
      %v433 = vpop.permute.xlu0 %432
      %436 = vset.pattern.permute.xlu0 0
      %437 = vperm.xlu0 %436, %v363
      %v438 = vpop.permute.xlu0 %437
      %441 = vset.pattern.permute.xlu0 0
      %442 = vperm.xlu0 %441, %v364
      %v443 = vpop.permute.xlu0 %442
      %vm445 = vcmask 72704
      %v447 = vsel %vm445, %v333, 0
      %v450 = vsel %vm445, %v334, 0
      %v453 = vsel %vm445, %v335, 0
      %v456 = vsel %vm445, %v336, 0
      %v459 = vsel %vm445, %v337, 0
      %v462 = vsel %vm445, %v338, 0
      %v465 = vsel %vm445, %v339, 0
      %v468 = vsel %vm445, %v340, 0
      %v471 = vsel %vm445, %v341, 0
      %v474 = vsel %vm445, %v342, 0
      %v477 = vsel %vm445, %v343, 0
      %v480 = vsel %vm445, %v344, 0
      %v483 = vsel %vm445, %v345, 0
      %v486 = vsel %vm445, %v346, 0
      %v489 = vsel %vm445, %v347, 0
      %v492 = vsel %vm445, %v348, 0
      %vm494 = vcmask 1040384
      %v496 = vsel %vm494, %v331, 0
      %v499 = vsel %vm494, %v332, 0
      %501 = vmatpush.msra.mxu0 0.0
      %502 = vmatpush.msra.mxu0 0.0
      %503 = vmatpush.msra.mxu0 0.0
      %504 = vmatpush.msra.mxu0 0.0
      %505 = vmatpush.msra.mxu0 0.0
      %506 = vmatpush.msra.mxu0 0.0
      %507 = vmatpush.msra.mxu0 0.0
      %508 = vmatpush.msra.mxu0 0.0
      %509 = vmatpush.msra.mxu0 0.0
      %510 = vmatpush.msra.mxu0 0.0
      %511 = vmatpush.msra.mxu0 0.0
      %512 = vmatpush.msra.mxu0 0.0
      %513 = vmatpush.msra.mxu0 0.0
      %514 = vmatpush.msra.mxu0 0.0
      %515 = vmatpush.msra.mxu0 %v496
      %516 = vmatpush.msra.mxu0 %v329
      %517 = vmatmul.f32.gmra.mxu0 %v447
      %v518 = vpop.f32.mrf.mxu0
      %v519 = vadd.f32 %v368, %v518
      %520 = vmatmul.f32.gmra.mxu0 %v450
      %v521 = vpop.f32.mrf.mxu0
      %v522 = vadd.f32 %v373, %v521
      %523 = vmatmul.f32.gmra.mxu0 %v453
      %v524 = vpop.f32.mrf.mxu0
      %v525 = vadd.f32 %v378, %v524
      %526 = vmatmul.f32.gmra.mxu0 %v456
      %v527 = vpop.f32.mrf.mxu0
      %v528 = vadd.f32 %v383, %v527
      %529 = vmatmul.f32.gmra.mxu0 %v459
      %v530 = vpop.f32.mrf.mxu0
      %v531 = vadd.f32 %v388, %v530
      %532 = vmatmul.f32.gmra.mxu0 %v462
      %v533 = vpop.f32.mrf.mxu0
      %v534 = vadd.f32 %v393, %v533
      %535 = vmatmul.f32.gmra.mxu0 %v465
      %v536 = vpop.f32.mrf.mxu0
      %v537 = vadd.f32 %v398, %v536
      %538 = vmatmul.f32.gmra.mxu0 %v468
      %v539 = vpop.f32.mrf.mxu0
      %v540 = vadd.f32 %v403, %v539
      %541 = vmatmul.f32.gmra.mxu0 %v471
      %v542 = vpop.f32.mrf.mxu0
      %v543 = vadd.f32 %v408, %v542
      %544 = vmatmul.f32.gmra.mxu0 %v474
      %v545 = vpop.f32.mrf.mxu0
      %v546 = vadd.f32 %v413, %v545
      %547 = vmatmul.f32.gmra.mxu0 %v477
      %v548 = vpop.f32.mrf.mxu0
      %v549 = vadd.f32 %v418, %v548
      %550 = vmatmul.f32.gmra.mxu0 %v480
      %v551 = vpop.f32.mrf.mxu0
      %v552 = vadd.f32 %v423, %v551
      %553 = vmatmul.f32.gmra.mxu0 %v483
      %v554 = vpop.f32.mrf.mxu0
      %v555 = vadd.f32 %v428, %v554
      %556 = vmatmul.f32.gmra.mxu0 %v486
      %v557 = vpop.f32.mrf.mxu0
      %v558 = vadd.f32 %v433, %v557
      %559 = vmatmul.f32.gmra.mxu0 %v489
      %v560 = vpop.f32.mrf.mxu0
      %v561 = vadd.f32 %v438, %v560
      %562 = vmatmul.f32.gmra.mxu0 %v492
      %v563 = vpop.f32.mrf.mxu0
      %v564 = vadd.f32 %v443, %v563
      %565 = vdwg.mxu0
      %566 = vmatpush.msra.mxu0 0.0
      %567 = vmatpush.msra.mxu0 0.0
      %568 = vmatpush.msra.mxu0 0.0
      %569 = vmatpush.msra.mxu0 0.0
      %570 = vmatpush.msra.mxu0 0.0
      %571 = vmatpush.msra.mxu0 0.0
      %572 = vmatpush.msra.mxu0 0.0
      %573 = vmatpush.msra.mxu0 0.0
      %574 = vmatpush.msra.mxu0 0.0
      %575 = vmatpush.msra.mxu0 0.0
      %576 = vmatpush.msra.mxu0 0.0
      %577 = vmatpush.msra.mxu0 0.0
      %578 = vmatpush.msra.mxu0 0.0
      %579 = vmatpush.msra.mxu0 0.0
      %580 = vmatpush.msra.mxu0 %v499
      %581 = vmatpush.msra.mxu0 %v330
      %582 = vmatmul.f32.gmra.mxu0 %v447
      %v583 = vpop.f32.mrf.mxu0
      %v584 = vadd.f32 %v368, %v583
      %585 = vmatmul.f32.gmra.mxu0 %v450
      %v586 = vpop.f32.mrf.mxu0
      %v587 = vadd.f32 %v373, %v586
      %588 = vmatmul.f32.gmra.mxu0 %v453
      %v589 = vpop.f32.mrf.mxu0
      %v590 = vadd.f32 %v378, %v589
      %591 = vmatmul.f32.gmra.mxu0 %v456
      %v592 = vpop.f32.mrf.mxu0
      %v593 = vadd.f32 %v383, %v592
      %594 = vmatmul.f32.gmra.mxu0 %v459
      %v595 = vpop.f32.mrf.mxu0
      %v596 = vadd.f32 %v388, %v595
      %597 = vmatmul.f32.gmra.mxu0 %v462
      %v598 = vpop.f32.mrf.mxu0
      %v599 = vadd.f32 %v393, %v598
      %600 = vmatmul.f32.gmra.mxu0 %v465
      %v601 = vpop.f32.mrf.mxu0
      %v602 = vadd.f32 %v398, %v601
      %603 = vmatmul.f32.gmra.mxu0 %v468
      %v604 = vpop.f32.mrf.mxu0
      %v605 = vadd.f32 %v403, %v604
      %606 = vmatmul.f32.gmra.mxu0 %v471
      %v607 = vpop.f32.mrf.mxu0
      %v608 = vadd.f32 %v408, %v607
      %609 = vmatmul.f32.gmra.mxu0 %v474
      %v610 = vpop.f32.mrf.mxu0
      %v611 = vadd.f32 %v413, %v610
      %612 = vmatmul.f32.gmra.mxu0 %v477
      %v613 = vpop.f32.mrf.mxu0
      %v614 = vadd.f32 %v418, %v613
      %615 = vmatmul.f32.gmra.mxu0 %v480
      %v616 = vpop.f32.mrf.mxu0
      %v617 = vadd.f32 %v423, %v616
      %618 = vmatmul.f32.gmra.mxu0 %v483
      %v619 = vpop.f32.mrf.mxu0
      %v620 = vadd.f32 %v428, %v619
      %621 = vmatmul.f32.gmra.mxu0 %v486
      %v622 = vpop.f32.mrf.mxu0
      %v623 = vadd.f32 %v433, %v622
      %624 = vmatmul.f32.gmra.mxu0 %v489
      %v625 = vpop.f32.mrf.mxu0
      %v626 = vadd.f32 %v438, %v625
      %627 = vmatmul.f32.gmra.mxu0 %v492
      %v628 = vpop.f32.mrf.mxu0
      %v629 = vadd.f32 %v443, %v628
      %630 = vdwg.mxu0
      %v631 = vmax.f32 %v519, 0.0
      %v632 = vmax.f32 %v584, 0.0
      %v633 = vmax.f32 %v522, 0.0
      %v634 = vmax.f32 %v587, 0.0
      %v635 = vmax.f32 %v525, 0.0
      %v636 = vmax.f32 %v590, 0.0
      %v637 = vmax.f32 %v528, 0.0
      %v638 = vmax.f32 %v593, 0.0
      %v639 = vmax.f32 %v531, 0.0
      %v640 = vmax.f32 %v596, 0.0
      %v641 = vmax.f32 %v534, 0.0
      %v642 = vmax.f32 %v599, 0.0
      %v643 = vmax.f32 %v537, 0.0
      %v644 = vmax.f32 %v602, 0.0
      %v645 = vmax.f32 %v540, 0.0
      %v646 = vmax.f32 %v605, 0.0
      %v647 = vmax.f32 %v543, 0.0
      %v648 = vmax.f32 %v608, 0.0
      %v649 = vmax.f32 %v546, 0.0
      %v650 = vmax.f32 %v611, 0.0
      %v651 = vmax.f32 %v549, 0.0
      %v652 = vmax.f32 %v614, 0.0
      %v653 = vmax.f32 %v552, 0.0
      %v654 = vmax.f32 %v617, 0.0
      %v655 = vmax.f32 %v555, 0.0
      %v656 = vmax.f32 %v620, 0.0
      %v657 = vmax.f32 %v558, 0.0
      %v658 = vmax.f32 %v623, 0.0
      %v659 = vmax.f32 %v561, 0.0
      %v660 = vmax.f32 %v626, 0.0
      %v661 = vmax.f32 %v564, 0.0
      %v662 = vmax.f32 %v629, 0.0
      %v663 = vld [vmem:[%s4] sm:$0x7]
      %664 = vmatpush.msra.mxu0 %v661
      %665 = vmatpush.msra.mxu0 %v659
      %666 = vmatpush.msra.mxu0 %v657
      %667 = vmatpush.msra.mxu0 %v655
      %668 = vmatpush.msra.mxu0 %v653
      %669 = vmatpush.msra.mxu0 %v651
      %670 = vmatpush.msra.mxu0 %v649
      %671 = vmatpush.msra.mxu0 %v647
      %672 = vmatpush.msra.mxu0 %v645
      %673 = vmatpush.msra.mxu0 %v643
      %674 = vmatpush.msra.mxu0 %v641
      %675 = vmatpush.msra.mxu0 %v639
      %676 = vmatpush.msra.mxu0 %v637
      %677 = vmatpush.msra.mxu0 %v635
      %678 = vmatpush.msra.mxu0 %v633
      %679 = vmatpush.msra.mxu0 %v631
      %680 = vmatmul.f32.gmra.mxu0 %v663
      %v681 = vpop.f32.mrf.mxu0
      %v682 = vadd.f32 0.0, %v681
      %683 = vdwg.mxu0
      %684 = vmatpush.msra.mxu0 %v662
      %685 = vmatpush.msra.mxu0 %v660
      %686 = vmatpush.msra.mxu0 %v658
      %687 = vmatpush.msra.mxu0 %v656
      %688 = vmatpush.msra.mxu0 %v654
      %689 = vmatpush.msra.mxu0 %v652
      %690 = vmatpush.msra.mxu0 %v650
      %691 = vmatpush.msra.mxu0 %v648
      %692 = vmatpush.msra.mxu0 %v646
      %693 = vmatpush.msra.mxu0 %v644
      %694 = vmatpush.msra.mxu0 %v642
      %695 = vmatpush.msra.mxu0 %v640
      %696 = vmatpush.msra.mxu0 %v638
      %697 = vmatpush.msra.mxu0 %v636
      %698 = vmatpush.msra.mxu0 %v634
      %699 = vmatpush.msra.mxu0 %v632
      %700 = vmatmul.f32.gmra.mxu0 %v663
      %v701 = vpop.f32.mrf.mxu0
      %v702 = vadd.f32 0.0, %v701
      %703 = vdwg.mxu0
      %v704 = vxor.u32 %v682, 2147483648
      %v705 = vxor.u32 %v702, 2147483648
      %v706 = vmul.f32 %v704, 1.442695
      %v707 = vpow.pop %v706
      %v708 = vmul.f32 %v705, 1.442695
      %v709 = vpow.pop %v708
      %v710 = vadd.f32 %v707, 1.0
      %v711 = vadd.f32 %v709, 1.0
      %v712 = vrcp.pop %v710
      %v713 = vmul.f32 %v710, %v712
      %v714 = vsub.f32 1.0, %v713
      %v715 = vmul.f32 %v712, %v714
      %v716 = vadd.f32 %v712, %v715
      %vm717 = vweird.f32 %v710
      %vm718 = vweird.f32 %v712
      %vm719 = vmor %vm717, %vm718
      %v720 = vsel %vm719, %v712, %v716
      %v721 = vand.u32 2147483647, %v710
      %vm722 = vcmp.eq.f32.partialorder %v721, 8.507059e+37
      %v723 = vand.u32 %v710, 2147483648
      %v724 = vor.u32 1.1754944e-38, %v723
      %v725 = vsel %vm722, %v724, %v720
      %v726 = vmul.f32 1.0, %v725
      %v727 = vrcp.pop %v711
      %v728 = vmul.f32 %v711, %v727
      %v729 = vsub.f32 1.0, %v728
      %v730 = vmul.f32 %v727, %v729
      %v731 = vadd.f32 %v727, %v730
      %vm732 = vweird.f32 %v711
      %vm733 = vweird.f32 %v727
      %vm734 = vmor %vm732, %vm733
      %v735 = vsel %vm734, %v727, %v731
      %v736 = vand.u32 2147483647, %v711
      %vm737 = vcmp.eq.f32.partialorder %v736, 8.507059e+37
      %v738 = vand.u32 %v711, 2147483648
      %v739 = vor.u32 1.1754944e-38, %v738
      %v740 = vsel %vm737, %v739, %v735
      %v741 = vmul.f32 1.0, %v740
      %742 = vst [vmem:[#allocation1] ss:$2 sm:$0xff] %v264
      %v743 = vld.sshfl [vmem:[#allocation1] sm:$0xff pattern:$0x75316420]
      %v744 = vld.sshfl [vmem:[#allocation1 + $0x8] sm:$0xff pattern:$0x75316420]
      %v747 = vadd.f32 %v726, %v743
      %v748 = vadd.f32 %v741, %v744
      %v749 = vmul.f32 %v747, 0.5
      %v750 = vmul.f32 %v748, 0.5
      %v753 = vrot.slane %v750, 4
      %vm754 = vcmask 1043456
      %v755 = vsel %vm754, %v749, %v753
      %757 = vst [vmem:[%s262] sm:$0x77] %v755
      %s758 = smul.u32 2, %s21
      %p759 = scmp.lt.s32.totalorder %s20, 1
      %s760 = scalar_select %p759, %s20, 1
      %p761 = scmp.lt.s32.totalorder %s758, 1
      %s762 = scalar_select %p761, %s758, 1
      %s763 = smul.addr %s760, 2
      %s764 = sadd.s32 %s762, %s763
      %s765 = smul.addr %s764, 4
      %s766 = scalar_lea.vmem %s5, %s765
      // Predicated region
      $region41: #{tpu_custom_call.1} parent=39 // pred_check
        %p767 = pneg %p160
      $region42: #{tpu_custom_call.1} parent=39 // pred_check_branch
        %769 = sbr.rel (%p767) target = $region44
      $region43: #{tpu_custom_call.1} parent=39 // pred_region
        %s770 = smul.u32 2, %s21
      $region44: #{tpu_custom_call.1} parent=39 // pred_fallthru
        _
    $region40: #{tpu_custom_call.1} parent=5 // pred_fallthru
      _
    %p771 = scmp.le.s32.totalorder 2, %s11
    // Predicated region
    $region45: #{tpu_custom_call.1} parent=5 // pred_check
      %p772 = pneg %p771
    $region46: #{tpu_custom_call.1} parent=5 // pred_check_branch
      %774 = sbr.rel (%p772) target = $region48
    $region47: #{tpu_custom_call.1} parent=5 // pred_region
      %s775 = ssub.s32 %s11, 2
      // Predicated region
      $region49: #{tpu_custom_call.1} parent=47 // pred_check
        %p776 = pneg %p166
      $region50: #{tpu_custom_call.1} parent=47 // pred_check_branch
        %778 = sbr.rel (%p776) target = $region52
      $region51: #{tpu_custom_call.1} parent=47 // pred_region
        %s779 = smul.u32 2, %s23
        %p780 = scmp.lt.s32.totalorder %s22, 1
        %s781 = scalar_select %p780, %s22, 1
        %p782 = scmp.lt.s32.totalorder %s779, 1
        %s783 = scalar_select %p782, %s779, 1
        %s784 = smul.addr %s781, 2
        %s785 = sadd.s32 %s783, %s784
        %s786 = smul.addr %s785, 4
        %s787 = scalar_lea.vmem %s5, %s786
      $region52: #{tpu_custom_call.1} parent=47 // pred_fallthru
        _
    $region48: #{tpu_custom_call.1} parent=5 // pred_fallthru
      _
  $region6: #{tpu_custom_call.1} parent=0 // loop_footer
    %s15 = sadd.s32 1, %s11
  $region7: #{tpu_custom_call.1} parent=0 // loop_footer_branch
    %10 = sbr.rel target = $region3
  $region8: #{tpu_custom_call.1} parent=0 // loop_exit
    _

</llo_original>
